<compile_context>
chip_gen: v5e
topology: v5e:2x2
jax: 0.10.0
libtpu: 0.0.40
codegen_flags: <defaults>
</compile_context>

<pallas_src>
import functools
import numpy as np
import jax
import jax.numpy as jnp
from jax import lax
from jax.experimental import pallas as pl
from jax.experimental.pallas import tpu as pltpu


def _bilinear_matrix(n_in, n_out):
    """Row-interp matrix matching F.interpolate(mode='bilinear', align_corners=True)."""
    A = np.zeros((n_out, n_in), np.float32)
    if n_in == 1:
        A[:, 0] = 1.0
        return A
    for i in range(n_out):
        src = i * (n_in - 1) / (n_out - 1)
        i0 = min(int(np.floor(src)), n_in - 2)
        frac = src - i0
        A[i, i0] += 1.0 - frac
        A[i, i0 + 1] += frac
    return A


def _pad_rows(A, pad):
    n_out, n_in = A.shape
    P = np.zeros((n_out + 2 * pad, n_in), np.float32)
    P[pad:pad + n_out, :] = A
    return P


def _deconv_kernel(x_ref, ah_ref, w_ref, b_ref, o_ref, *, KH, WC, KPAD):
    # x_ref : (NB, H,  W*Cin)      bf16  channel-last, W & Cin fused in lanes
    # ah_ref: (KH, Ho, H)          bf16  per-kh shifted + zero-padded height upsample
    # w_ref : (KPAD, Wo*Cout)      bf16  KH-stacked folded (kw-taps x W-upsample) weights,
    #                                    zero-padded along K to a multiple of 128
    # b_ref : (1, Wo*Cout)         f32
    # o_ref : (NB, Ho, Wo*Cout)    f32
    NB, H, _ = x_ref.shape
    _, Ho, _ = ah_ref.shape
    DC = o_ref.shape[-1]

    x = x_ref[...]                                                   # (NB, H, WC) bf16

    # Height upsample per kh tap, applied per image (batched matmul with the shared
    # (Ho, H) matrix broadcast over the image axis -> no NB^2 block-diagonal).
    slabs = []
    for kh in range(KH):
        ahk = jnp.broadcast_to(ah_ref[kh][None], (NB, Ho, H))        # bf16, tiny
        y = jnp.einsum('noh,nhd->nod', ahk, x,
                       preferred_element_type=jnp.float32)           # f32 accumulate
        slabs.append(y.astype(jnp.bfloat16))
    if KPAD > KH * WC:
        # zero-pad the contraction axis up to a lane multiple (unmasked vregs, full
        # MXU K-width); matching weight rows are zero on the host side.
        slabs.append(jnp.zeros((NB, Ho, KPAD - KH * WC), jnp.bfloat16))

    # K-concatenated tap matmul: ONE dot with K = KPAD instead of KH dots with
    # K = W*Cin plus an f32 accumulation chain.
    ycat = jnp.concatenate(slabs, axis=-1)                           # (NB, Ho, KPAD) bf16
    ycat2 = ycat.reshape(NB * Ho, KPAD)
    out = jnp.dot(ycat2, w_ref[...], preferred_element_type=jnp.float32)
    out = out + b_ref[...]                                           # (NB*Ho, DC) + (1, DC)
    o_ref[...] = out.reshape(NB, Ho, DC).astype(o_ref.dtype)


def deconv_pallas(x_nchw, w_oihw, bias, padding=1, images_per_block=None):
    N, Cin, H, W = x_nchw.shape
    Cout, _, KH, KW = w_oihw.shape
    Hup, Wup = 2 * H, 2 * W
    Hp, Wp = Hup + 2 * padding, Wup + 2 * padding
    Ho, Wo = Hp - KH + 1, Wp - KW + 1
    WC, DC = W * Cin, Wo * Cout

    # Grid policy (review items 1 & 9): keep G >= 2 so the "parallel" grid axis can
    # shard across v7x's two TensorCores and the x/out DMAs pipeline with compute;
    # grow NB (images per step -> M = NB*Ho rows) when the batch allows it.
    NB = max(1, N // 2) if images_per_block is None else images_per_block
    assert N % NB == 0, "batch must be divisible by images_per_block"
    G = N // NB

    # ---- host-side parameter / layout glue ----
    ah_pad = _pad_rows(_bilinear_matrix(H, Hup), padding)                 # (Hp, H)
    aw_pad = _pad_rows(_bilinear_matrix(W, Wup), padding)                 # (Wp, W)

    # Per-kh shifted height-upsample matrices: output row o of tap kh reads
    # padded-upsampled row o+kh.
    ah_shift = np.stack([ah_pad[kh:kh + Ho, :] for kh in range(KH)])      # (KH, Ho, H)

    # Folded per-kh weights:
    #   Wfold[kh][w*Cin+ci, wo*Cout+co] = sum_kw aw_pad[wo+kw, w] * w[co, ci, kh, kw]
    w_hwio = np.transpose(np.asarray(w_oihw, np.float32), (2, 3, 1, 0))   # (KH,KW,Cin,Cout)
    aw_shift = np.stack([aw_pad[kw:kw + Wo, :] for kw in range(KW)])      # (KW, Wo, W)
    wfold = np.einsum('vow,hvic->hwioc', aw_shift, w_hwio)                # (KH,W,Cin,Wo,Cout)

    # K-concatenate the KH taps along the contraction axis; zero-pad K to a multiple
    # of 128 (192 -> 256 here) so the dominant matmul fills the MXU width.
    K_real = KH * WC
    KPAD = ((K_real + 127) // 128) * 128
    wcat = np.zeros((KPAD, DC), np.float32)
    wcat[:K_real, :] = wfold.reshape(K_real, DC)

    bias_big = np.tile(np.asarray(bias, np.float32), Wo)[None, :]         # (1, Wo*Cout)

    # NCHW -> (N, H, W*Cin) channel-last, bf16 for half the input DMA bytes.
    # TODO(synk): carrying NHWC/(H, W*Cin) activations between layers would remove
    # these boundary transposes (each re-streams the tensor through HBM once).
    x_flat = (jnp.transpose(x_nchw, (0, 2, 3, 1))
              .reshape(N, H, WC)
              .astype(jnp.bfloat16))

    kernel = functools.partial(_deconv_kernel, KH=KH, WC=WC, KPAD=KPAD)

    # Grid-invariant operands use constant index_maps (DMA'd once).  For scaled-up
    # configs add pipeline_mode=pl.Buffered(1) to ah/wcat/bias specs to drop their
    # second pipeline buffer; at this size it is ~0.13 MiB and not worth the knob.
    out_flat = pl.pallas_call(
        kernel,
        out_shape=jax.ShapeDtypeStruct((N, Ho, DC), jnp.float32),
        grid_spec=pltpu.PrefetchScalarGridSpec(
            num_scalar_prefetch=0,
            grid=(G,),
            in_specs=[
                pl.BlockSpec((NB, H, WC), lambda g: (g, 0, 0)),    # per-step x block
                pl.BlockSpec((KH, Ho, H), lambda g: (0, 0, 0)),    # grid-invariant
                pl.BlockSpec((KPAD, DC), lambda g: (0, 0)),        # grid-invariant
                pl.BlockSpec((1, DC), lambda g: (0, 0)),           # grid-invariant
            ],
            out_specs=pl.BlockSpec((NB, Ho, DC), lambda g: (g, 0, 0)),
        ),
        compiler_params=pltpu.CompilerParams(
            dimension_semantics=("parallel",)),
    )(x_flat,
      jnp.asarray(ah_shift, dtype=jnp.bfloat16),
      jnp.asarray(wcat, dtype=jnp.bfloat16),
      jnp.asarray(bias_big))

    out = (out_flat.reshape(N, Ho, Wo, Cout)
           .transpose(0, 3, 1, 2))                                  # back to NCHW
    return out


def deconv_ref(x_nchw, w_oihw, bias, padding=1):
    """Pure-JAX f32 reference: bilinear(align_corners=True, x2) upsample + Conv2d."""
    N, Cin, H, W = x_nchw.shape
    Cout = w_oihw.shape[0]
    A_h = jnp.asarray(_bilinear_matrix(H, 2 * H))
    A_w = jnp.asarray(_bilinear_matrix(W, 2 * W))
    up = jnp.einsum('oh,nchw->ncow', A_h, x_nchw, precision=lax.Precision.HIGHEST)
    up = jnp.einsum('pw,ncow->ncop', A_w, up, precision=lax.Precision.HIGHEST)
    out = lax.conv_general_dilated(
        up, w_oihw, window_strides=(1, 1),
        padding=[(padding, padding), (padding, padding)],
        dimension_numbers=('NCHW', 'OIHW', 'NCHW'),
        precision=lax.Precision.HIGHEST)
    return out + bias.reshape(1, Cout, 1, 1)


if __name__ == "__main__":
    # deconv(input_channel=4, output_channel=8, kernel_size=3, padding=1)
    N, Cin, H, W = 2, 4, 16, 16
    Cout, KH, KW, padding = 8, 3, 3, 1

    key = jax.random.PRNGKey(0)
    kx, kw, kb = jax.random.split(key, 3)
    x = jax.random.normal(kx, (N, Cin, H, W), dtype=jnp.float32)
    bound = 1.0 / np.sqrt(Cin * KH * KW)          # PyTorch Conv2d default init range
    w = jax.random.uniform(kw, (Cout, Cin, KH, KW), minval=-bound, maxval=bound,
                           dtype=jnp.float32)
    b = jax.random.uniform(kb, (Cout,), minval=-bound, maxval=bound,
                           dtype=jnp.float32)

    out = jax.block_until_ready(deconv_pallas(x, w, b, padding=padding))
    ref = jax.block_until_ready(deconv_ref(x, w, b, padding=padding))

    assert out.shape == (N, Cout, 2 * H, 2 * W), out.shape
    # Both matmuls now run with bf16 operands (f32 accumulation), vs the f32
    # HIGHEST-precision reference -> slightly relaxed tolerance.
    np.testing.assert_allclose(np.asarray(out), np.asarray(ref), rtol=2e-2, atol=2e-2)
    print("KERNEL_OK")
</pallas_src>

<mosaic_0001>
module attributes {stable_mosaic.version = 11 : i64} {
  func.func @_deconv_kernel(%arg0: i32, %arg1: memref<1x16x64xbf16, #tpu.memory_space<vmem>>, %arg2: memref<3x32x16xbf16, #tpu.memory_space<vmem>>, %arg3: memref<256x256xbf16, #tpu.memory_space<vmem>>, %arg4: memref<1x256xf32, #tpu.memory_space<vmem>>, %arg5: memref<1x32x256xf32, #tpu.memory_space<vmem>>) attributes {dimension_semantics = [#tpu.dimension_semantics<parallel>], iteration_bounds = array<i64: 2>, scalar_prefetch = 0 : i64, scratch_operands = 0 : i64, tpu.core_type = #tpu.core_type<tc>, window_params = [{transform_indices = @transform_0, window_bounds = array<i64: 1, 16, 64>}, {pipeline_mode = #tpu.pipeline_mode<synchronous>, transform_indices = @transform_1, window_bounds = array<i64: 3, 32, 16>}, {pipeline_mode = #tpu.pipeline_mode<synchronous>, transform_indices = @transform_2, window_bounds = array<i64: 256, 256>}, {pipeline_mode = #tpu.pipeline_mode<synchronous>, transform_indices = @transform_3, window_bounds = array<i64: 1, 256>}, {transform_indices = @transform_4, window_bounds = array<i64: 1, 32, 256>}]} {
    %c0 = arith.constant 0 : index
    %c0_0 = arith.constant 0 : index
    %c0_1 = arith.constant 0 : index
    %0 = vector.load %arg1[%c0, %c0_0, %c0_1] : memref<1x16x64xbf16, #tpu.memory_space<vmem>>, vector<1x16x64xbf16>
    %c0_2 = arith.constant 0 : index
    %c0_3 = arith.constant 0 : index
    %c0_4 = arith.constant 0 : index
    %1 = vector.load %arg2[%c0_2, %c0_3, %c0_4] : memref<3x32x16xbf16, #tpu.memory_space<vmem>>, vector<1x32x16xbf16>
    %2 = vector.shape_cast %1 : vector<1x32x16xbf16> to vector<32x16xbf16>
    %3 = vector.shape_cast %2 : vector<32x16xbf16> to vector<1x32x16xbf16>
    "tpu.trace_start"() <{level = 10 : i32, message = "noh,nhd->nod"}> : () -> ()
    %cst = arith.constant dense<0.000000e+00> : vector<1x32x64xf32>
    %4 = tpu.matmul %3, %0, %cst {dimension_numbers = #tpu.dot_dimension_numbers<[2], [1], [1], [2], [0, 0, 0, 1, 1, 2], [0], [0]>} : vector<1x32x16xbf16>, vector<1x16x64xbf16>, vector<1x32x64xf32> -> vector<1x32x64xf32>
    "tpu.trace_stop"() : () -> ()
    %5 = arith.truncf %4 : vector<1x32x64xf32> to vector<1x32x64xbf16>
    %c1 = arith.constant 1 : index
    %c0_5 = arith.constant 0 : index
    %c0_6 = arith.constant 0 : index
    %6 = vector.load %arg2[%c1, %c0_5, %c0_6] : memref<3x32x16xbf16, #tpu.memory_space<vmem>>, vector<1x32x16xbf16>
    %7 = vector.shape_cast %6 : vector<1x32x16xbf16> to vector<32x16xbf16>
    %8 = vector.shape_cast %7 : vector<32x16xbf16> to vector<1x32x16xbf16>
    "tpu.trace_start"() <{level = 10 : i32, message = "noh,nhd->nod"}> : () -> ()
    %cst_7 = arith.constant dense<0.000000e+00> : vector<1x32x64xf32>
    %9 = tpu.matmul %8, %0, %cst_7 {dimension_numbers = #tpu.dot_dimension_numbers<[2], [1], [1], [2], [0, 0, 0, 1, 1, 2], [0], [0]>} : vector<1x32x16xbf16>, vector<1x16x64xbf16>, vector<1x32x64xf32> -> vector<1x32x64xf32>
    "tpu.trace_stop"() : () -> ()
    %10 = arith.truncf %9 : vector<1x32x64xf32> to vector<1x32x64xbf16>
    %c2 = arith.constant 2 : index
    %c0_8 = arith.constant 0 : index
    %c0_9 = arith.constant 0 : index
    %11 = vector.load %arg2[%c2, %c0_8, %c0_9] : memref<3x32x16xbf16, #tpu.memory_space<vmem>>, vector<1x32x16xbf16>
    %12 = vector.shape_cast %11 : vector<1x32x16xbf16> to vector<32x16xbf16>
    %13 = vector.shape_cast %12 : vector<32x16xbf16> to vector<1x32x16xbf16>
    "tpu.trace_start"() <{level = 10 : i32, message = "noh,nhd->nod"}> : () -> ()
    %cst_10 = arith.constant dense<0.000000e+00> : vector<1x32x64xf32>
    %14 = tpu.matmul %13, %0, %cst_10 {dimension_numbers = #tpu.dot_dimension_numbers<[2], [1], [1], [2], [0, 0, 0, 1, 1, 2], [0], [0]>} : vector<1x32x16xbf16>, vector<1x16x64xbf16>, vector<1x32x64xf32> -> vector<1x32x64xf32>
    "tpu.trace_stop"() : () -> ()
    %15 = arith.truncf %14 : vector<1x32x64xf32> to vector<1x32x64xbf16>
    %cst_11 = arith.constant 0.000000e+00 : bf16
    %16 = vector.broadcast %cst_11 : bf16 to vector<1x32x64xbf16>
    %17 = tpu.concatenate %5, %10, %15, %16 in 2 : vector<1x32x64xbf16>, vector<1x32x64xbf16>, vector<1x32x64xbf16>, vector<1x32x64xbf16> -> vector<1x32x256xbf16>
    %18 = vector.shape_cast %17 : vector<1x32x256xbf16> to vector<32x256xbf16>
    %c0_12 = arith.constant 0 : index
    %c0_13 = arith.constant 0 : index
    %19 = vector.load %arg3[%c0_12, %c0_13] : memref<256x256xbf16, #tpu.memory_space<vmem>>, vector<256x256xbf16>
    %cst_14 = arith.constant dense<0.000000e+00> : vector<32x256xf32>
    %20 = tpu.matmul %18, %19, %cst_14 {dimension_numbers = #tpu.dot_dimension_numbers<[1], [0], [0], [1], [0, 0, 1, 1], [], []>} : vector<32x256xbf16>, vector<256x256xbf16>, vector<32x256xf32> -> vector<32x256xf32>
    %c0_15 = arith.constant 0 : index
    %c0_16 = arith.constant 0 : index
    %21 = vector.load %arg4[%c0_15, %c0_16] : memref<1x256xf32, #tpu.memory_space<vmem>>, vector<1x256xf32>
    %22 = vector.broadcast %21 : vector<1x256xf32> to vector<32x256xf32>
    %23 = arith.addf %20, %22 : vector<32x256xf32>
    %24 = vector.shape_cast %23 : vector<32x256xf32> to vector<1x32x256xf32>
    %c0_17 = arith.constant 0 : index
    %c0_18 = arith.constant 0 : index
    %c0_19 = arith.constant 0 : index
    %25 = vector.load %arg5[%c0_17, %c0_18, %c0_19] : memref<1x32x256xf32, #tpu.memory_space<vmem>>, vector<1x32x256xf32>
    tpu.vector_store %arg5[%c0_17, %c0_18, %c0_19], %24 {strides = array<i32>} : memref<1x32x256xf32, #tpu.memory_space<vmem>>, vector<1x32x256xf32>,
    return
  }
  func.func @transform_0(%arg0: i32) -> (i32, i32, i32) {
    %c0_i32 = arith.constant 0 : i32
    %c0_i32_0 = arith.constant 0 : i32
    %c0_i32_1 = arith.constant 0 : i32
    return %arg0, %c0_i32, %c0_i32_0 : i32, i32, i32
  }
  func.func @transform_1(%arg0: i32) -> (i32, i32, i32) {
    %c0_i32 = arith.constant 0 : i32
    %c0_i32_0 = arith.constant 0 : i32
    %c0_i32_1 = arith.constant 0 : i32
    %c0_i32_2 = arith.constant 0 : i32
    return %c0_i32, %c0_i32_0, %c0_i32_1 : i32, i32, i32
  }
  func.func @transform_2(%arg0: i32) -> (i32, i32) {
    %c0_i32 = arith.constant 0 : i32
    %c0_i32_0 = arith.constant 0 : i32
    %c0_i32_1 = arith.constant 0 : i32
    return %c0_i32, %c0_i32_0 : i32, i32
  }
  func.func @transform_3(%arg0: i32) -> (i32, i32) {
    %c0_i32 = arith.constant 0 : i32
    %c0_i32_0 = arith.constant 0 : i32
    %c0_i32_1 = arith.constant 0 : i32
    return %c0_i32, %c0_i32_0 : i32, i32
  }
  func.func @transform_4(%arg0: i32) -> (i32, i32, i32) {
    %c0_i32 = arith.constant 0 : i32
    %c0_i32_0 = arith.constant 0 : i32
    %c0_i32_1 = arith.constant 0 : i32
    return %arg0, %c0_i32, %c0_i32_0 : i32, i32, i32
  }
}

</mosaic_0001>

<llo_original>
// kernel: tpu_custom_call.1
$region0: #{tpu_custom_call.1}
  #allocation0 [shape = 'u32[]', space=smem, size = 0x4, offset = 0x4, fixed_abs, tag = 'smem constant byte address 0x4 - core index']
  #allocation1 [shape = 'u32[72,128]{1,0:T(1,128)}', space=vmem, size = 0x9000, scoped, tag = 'internal scratch']
  %s0 = inlined_call_operand.vmem [shape: bf16[2,16,64], index: 0, kind: input, shape index: {}]
  %s1 = inlined_call_operand.vmem [shape: bf16[3,32,16], index: 1, kind: input, shape index: {}]
  %s2 = inlined_call_operand.hbm [shape: bf16[256,256], index: 2, kind: input, shape index: {}]
  %s3 = inlined_call_operand.vmem [shape: f32[1,256], index: 3, kind: input, shape index: {}]
  %s4 = inlined_call_operand.hbm [shape: f32[2,32,256], index: 4, kind: output, shape index: {}]
  %s5 = sld [smem:[#allocation0]]
  $region53: #{tpu_custom_call.1} parent=0
    _
  %s7 = ssub.s32 1, %s5
  %s8 = scalar_select 0, %s7, %s5
  $region1: #{tpu_custom_call.1} parent=0
    #allocation2 [shape = 'u8[131072]{0}', space=vmem, size = 0x20000, scoped, tag = 'input window, operand 2, single buffered']
    #allocation3 [shape = 's32[2]{0}', space=sflag, size = 0x8, scoped, tag = 'scoped memory for tpu_custom_call.1']
    #allocation4 [shape = 's32[2]{0}', space=sflag, size = 0x8, scoped, tag = 'scoped memory for tpu_custom_call.1']
    #allocation5 [shape = 'u8[65536]{0}', space=vmem, size = 0x10000, scoped, tag = 'output window, operand 0']
    %9 = vsyncpa [#allocation3], 0
    %10 = vsyncpa [#allocation4], 0
    %s11 = scalar_lea.sflag [#allocation4], 1
    %12 = vsyncpa %s11, 0
    loop: start=0, step=1, limit=4
    $region2: #{tpu_custom_call.1} parent=1 // loop_pre_header
      _
    $region3: #{tpu_custom_call.1} parent=1 // loop_header
      %s14 = sphi 0, %s18
      %p15 = scmp.ge.s32.totalorder %s14, 4
      %s24 = sphi 0, %s26
      %s27 = sphi 0, %s24
      %s28 = sphi 0, %s27
      %s44 = sphi 0, %s28
      %s48 = sphi 0, %s48
      %s50 = sphi 0, %s48
      %s51 = sphi 0, %s50
      %s65 = sphi 0, %s51
      %s69 = sphi 0, %s69
      %s71 = sphi 0, %s69
      %s72 = sphi 0, %s71
      %s86 = sphi 0, %s72
      %s90 = sphi 0, %s90
      %s92 = sphi 0, %s90
      %s93 = sphi 0, %s92
      %s107 = sphi 0, %s93
      %s113 = sphi 0, %s115
      %s116 = sphi 0, %s113
      %s117 = sphi 0, %s116
      %s133 = sphi 0, %s117
    $region4: #{tpu_custom_call.1} parent=1 // loop_header_branch
      %17 = sbr.rel (%p15) target = $region8
    $region5: #{tpu_custom_call.1} parent=1 // loop_body
      %s19 = ssub.s32 %s14, 1
      %s20 = ssub.s32 %s14, 2
      %s21 = sadd.s32 %s14, 1
      %s22 = ssub.s32 %s14, %s21
      %p23 = scmp.eq.s32.totalorder %s22, 0
      %s25 = sadd.s32 %s24, 1
      %s26 = scalar_select %p23, %s24, %s25
      %p29 = pneg %p23
      %p30 = scmp.eq.s32.totalorder %s14, 1
      %p31 = por %p29, %p30
      %p32 = scmp.ne.s32.totalorder %s24, %s27
      %p33 = scmp.eq.s32.totalorder %s14, 0
      %p34 = por %p32, %p33
      %p35 = scmp.ne.s32.totalorder %s24, %s27
      %p36 = scmp.eq.s32.totalorder %s19, 1
      %p37 = por %p35, %p36
      %p38 = scmp.ne.s32.totalorder %s27, %s28
      %p39 = scmp.eq.s32.totalorder %s19, 0
      %p40 = por %p38, %p39
      %p41 = scmp.ne.s32.totalorder %s27, %s28
      %p42 = scmp.eq.s32.totalorder %s20, 1
      %p43 = por %p41, %p42
      %p45 = scmp.ne.s32.totalorder %s28, %s44
      %p46 = scmp.eq.s32.totalorder %s20, 0
      %p47 = por %p45, %p46
      %s49 = sadd.s32 %s48, 1
      %p52 = scmp.eq.s32.totalorder %s14, 1
      %p53 = scmp.ne.s32.totalorder %s48, %s50
      %p54 = scmp.eq.s32.totalorder %s14, 0
      %p55 = por %p53, %p54
      %p56 = scmp.ne.s32.totalorder %s48, %s50
      %p57 = scmp.eq.s32.totalorder %s19, 1
      %p58 = por %p56, %p57
      %p59 = scmp.ne.s32.totalorder %s50, %s51
      %p60 = scmp.eq.s32.totalorder %s19, 0
      %p61 = por %p59, %p60
      %p62 = scmp.ne.s32.totalorder %s50, %s51
      %p63 = scmp.eq.s32.totalorder %s20, 1
      %p64 = por %p62, %p63
      %p66 = scmp.ne.s32.totalorder %s51, %s65
      %p67 = scmp.eq.s32.totalorder %s20, 0
      %p68 = por %p66, %p67
      %s70 = sadd.s32 %s69, 1
      %p73 = scmp.eq.s32.totalorder %s14, 1
      %p74 = scmp.ne.s32.totalorder %s69, %s71
      %p75 = scmp.eq.s32.totalorder %s14, 0
      %p76 = por %p74, %p75
      %p77 = scmp.ne.s32.totalorder %s69, %s71
      %p78 = scmp.eq.s32.totalorder %s19, 1
      %p79 = por %p77, %p78
      %p80 = scmp.ne.s32.totalorder %s71, %s72
      %p81 = scmp.eq.s32.totalorder %s19, 0
      %p82 = por %p80, %p81
      %p83 = scmp.ne.s32.totalorder %s71, %s72
      %p84 = scmp.eq.s32.totalorder %s20, 1
      %p85 = por %p83, %p84
      %p87 = scmp.ne.s32.totalorder %s72, %s86
      %p88 = scmp.eq.s32.totalorder %s20, 0
      %p89 = por %p87, %p88
      %s91 = sadd.s32 %s90, 1
      %p94 = scmp.eq.s32.totalorder %s14, 1
      %p95 = scmp.ne.s32.totalorder %s90, %s92
      %p96 = scmp.eq.s32.totalorder %s14, 0
      %p97 = por %p95, %p96
      %p98 = scmp.ne.s32.totalorder %s90, %s92
      %p99 = scmp.eq.s32.totalorder %s19, 1
      %p100 = por %p98, %p99
      %p101 = scmp.ne.s32.totalorder %s92, %s93
      %p102 = scmp.eq.s32.totalorder %s19, 0
      %p103 = por %p101, %p102
      %p104 = scmp.ne.s32.totalorder %s92, %s93
      %p105 = scmp.eq.s32.totalorder %s20, 1
      %p106 = por %p104, %p105
      %p108 = scmp.ne.s32.totalorder %s93, %s107
      %p109 = scmp.eq.s32.totalorder %s20, 0
      %p110 = por %p108, %p109
      %s111 = ssub.s32 %s14, %s21
      %p112 = scmp.eq.s32.totalorder %s111, 0
      %s114 = sadd.s32 %s113, 1
      %s115 = scalar_select %p112, %s113, %s114
      %p118 = pneg %p112
      %p119 = scmp.eq.s32.totalorder %s14, 1
      %p120 = por %p118, %p119
      %p121 = scmp.ne.s32.totalorder %s113, %s116
      %p122 = scmp.eq.s32.totalorder %s14, 0
      %p123 = por %p121, %p122
      %p124 = scmp.ne.s32.totalorder %s113, %s116
      %p125 = scmp.eq.s32.totalorder %s19, 1
      %p126 = por %p124, %p125
      %p127 = scmp.ne.s32.totalorder %s116, %s117
      %p128 = scmp.eq.s32.totalorder %s19, 0
      %p129 = por %p127, %p128
      %p130 = scmp.ne.s32.totalorder %s116, %s117
      %p131 = scmp.eq.s32.totalorder %s20, 1
      %p132 = por %p130, %p131
      %p134 = scmp.ne.s32.totalorder %s117, %s133
      %p135 = scmp.eq.s32.totalorder %s20, 0
      %p136 = por %p134, %p135
      %p137 = scmp.le.s32.totalorder 1, %s14
      %p138 = scmp.lt.s32.totalorder %s14, 3
      %p139 = pnand %p137, %p138
      %p140 = pneg %p139
      // Predicated region
      $region9: #{tpu_custom_call.1} parent=5 // pred_check
        _
      $region10: #{tpu_custom_call.1} parent=5 // pred_check_branch
        %142 = sbr.rel (%p139) target = $region12
      $region11: #{tpu_custom_call.1} parent=5 // pred_region
        %s143 = ssub.s32 %s14, 1
        // Predicated region
        $region13: #{tpu_custom_call.1} parent=11 // pred_check
          %p144 = pneg %p61
        $region14: #{tpu_custom_call.1} parent=11 // pred_check_branch
          %146 = sbr.rel (%p144) target = $region16
        $region15: #{tpu_custom_call.1} parent=11 // pred_region
          _
        $region16: #{tpu_custom_call.1} parent=11 // pred_fallthru
          _
        // Predicated region
        $region17: #{tpu_custom_call.1} parent=11 // pred_check
          %p147 = pneg %p82
        $region18: #{tpu_custom_call.1} parent=11 // pred_check_branch
          %149 = sbr.rel (%p147) target = $region20
        $region19: #{tpu_custom_call.1} parent=11 // pred_region
          %151 = vsyncadd [#allocation3], 0
          %s152 = sshll.u32 %s2, 4
          %s153 = int_to_ptr.hbm [resolvable:$true] %s152
          %s154 = sshll.u32 [#allocation2], 4
          %s155 = int_to_ptr.vmem [resolvable:$true] %s154
          %160 = dma.hbm_to_vmem [thread:$0]  %s153, 4096, %s155, [#allocation3], 128, 128, 8
        $region20: #{tpu_custom_call.1} parent=11 // pred_fallthru
          _
        // Predicated region
        $region21: #{tpu_custom_call.1} parent=11 // pred_check
          %p161 = pneg %p103
        $region22: #{tpu_custom_call.1} parent=11 // pred_check_branch
          %163 = sbr.rel (%p161) target = $region24
        $region23: #{tpu_custom_call.1} parent=11 // pred_region
          _
        $region24: #{tpu_custom_call.1} parent=11 // pred_fallthru
          _
      $region12: #{tpu_custom_call.1} parent=5 // pred_fallthru
        _
      %p164 = scmp.lt.s32.totalorder %s14, 2
      // Predicated region
      $region25: #{tpu_custom_call.1} parent=5 // pred_check
        %p165 = pneg %p164
      $region26: #{tpu_custom_call.1} parent=5 // pred_check_branch
        %167 = sbr.rel (%p165) target = $region28
      $region27: #{tpu_custom_call.1} parent=5 // pred_region
        // Predicated region
        $region29: #{tpu_custom_call.1} parent=27 // pred_check
          %p168 = pneg %p34
        $region30: #{tpu_custom_call.1} parent=27 // pred_check_branch
          %170 = sbr.rel (%p168) target = $region32
        $region31: #{tpu_custom_call.1} parent=27 // pred_region
          %p171 = scmp.lt.s32.totalorder %s14, 1
          %s172 = scalar_select %p171, %s14, 1
          %s173 = smul.addr %s172, 2
          %s174 = smul.addr %s173, 4
          %s175 = scalar_lea.vmem %s0, %s174
        $region32: #{tpu_custom_call.1} parent=27 // pred_fallthru
          _
      $region28: #{tpu_custom_call.1} parent=5 // pred_fallthru
        _
      %p176 = scmp.le.s32.totalorder 1, %s14
      %p177 = scmp.lt.s32.totalorder %s14, 3
      %p178 = pnand %p176, %p177
      %p179 = pneg %p178
      // Predicated region
      $region33: #{tpu_custom_call.1} parent=5 // pred_check
        _
      $region34: #{tpu_custom_call.1} parent=5 // pred_check_branch
        %181 = sbr.rel (%p178) target = $region36
      $region35: #{tpu_custom_call.1} parent=5 // pred_region
        %s182 = ssub.s32 %s14, 1
        // Predicated region
        $region37: #{tpu_custom_call.1} parent=35 // pred_check
          %p183 = pneg %p82
        $region38: #{tpu_custom_call.1} parent=35 // pred_check_branch
          %185 = sbr.rel (%p183) target = $region40
        $region39: #{tpu_custom_call.1} parent=35 // pred_region
          %187 = dma.done [#allocation3], 4096
        $region40: #{tpu_custom_call.1} parent=35 // pred_fallthru
          _
        %p188 = scmp.lt.s32.totalorder %s19, 1
        %s189 = scalar_select %p188, %s19, 1
        %s190 = smul.addr %s189, 2
        %s191 = smul.addr %s190, 4
        %s192 = scalar_lea.vmem %s0, %s191
        %p193 = pneg %p40
        %p194 = pneg %p37
        %p195 = pneg %p61
        %p196 = pneg %p58
        %p197 = pneg %p82
        %p198 = pneg %p79
        %p199 = pneg %p103
        %p200 = pneg %p100
        %p201 = pneg %p129
        %p202 = pneg %p126
        %s203 = sand.u32 %s116, 1
        %s204 = scalar_lea.sflag [#allocation4], %s203
        %s205 = sand.u32 %s116, 1
        %s206 = smul.addr %s205, 64
        %s207 = scalar_lea.vmem [#allocation5], %s206
        %p208 = scmp.lt.s32.totalorder %s19, 1
        %s209 = scalar_select %p208, %s19, 1
        %s210 = smul.addr %s209, 2
        %s211 = smul.addr %s210, 4
        %s212 = scalar_lea.vmem %s0, %s211
        %v214 = vld [vmem:[%s212] sm:$0xf]
        %v215 = vld [vmem:[%s212 + $0x4] sm:$0xf]
        %v216 = vld [vmem:[%s1] sm:$0xf]
        %v217 = vld [vmem:[%s1 + $0x4] sm:$0xf]
        %v218 = vld [vmem:[%s1 + $0x8] sm:$0xf]
        %v219 = vld [vmem:[%s1 + $0xc] sm:$0xf]
        %v224 = vunpack.c.l.b16 %v216
        %v225 = vunpack.c.l.b16 %v217
        %v226 = vunpack.c.l.b16 %v218
        %v227 = vunpack.c.l.b16 %v219
        %v228 = vpack.c.b16 %v225, %v224
        %v229 = vpack.c.b16 %v227, %v226
        %v232 = vunpack.c.l.b16 %v214
        %v233 = vunpack.c.l.b16 %v215
        %v234 = vpack.c.b16 %v233, %v232
        %vm236 = vcmask 130048
        %v238 = vsel %vm236, %v228, 0
        %v241 = vsel %vm236, %v229, 0
        %243 = vmatpush.bf16.msra.mxu0 0
        %244 = vmatpush.bf16.msra.mxu0 0
        %245 = vmatpush.bf16.msra.mxu0 0
        %246 = vmatpush.bf16.msra.mxu0 0
        %247 = vmatpush.bf16.msra.mxu0 0
        %248 = vmatpush.bf16.msra.mxu0 0
        %249 = vmatpush.bf16.msra.mxu0 0
        %250 = vmatpush.bf16.msra.mxu0 %v234
        %251 = vmatmul.bf16.gmra.mxu0 %v238
        %v252 = vpop.f32.mrf.mxu0
        %v253 = vadd.f32 0.0, %v252
        %v254 = vpop.f32.mrf.mxu0
        %v255 = vadd.f32 0.0, %v254
        %256 = vmatmul.bf16.gmra.mxu0 %v241
        %v257 = vpop.f32.mrf.mxu0
        %v258 = vadd.f32 0.0, %v257
        %v259 = vpop.f32.mrf.mxu0
        %v260 = vadd.f32 0.0, %v259
        %261 = vdwg.mxu0
        %v262 = vpack.c.bf16 %v253, %v253
        %v263 = vpack.c.bf16 %v255, %v255
        %v264 = vpack.c.bf16 %v258, %v258
        %v265 = vpack.c.bf16 %v260, %v260
        %s266 = scalar_lea.vmem %s1, 16
        %v267 = vld [vmem:[%s266] sm:$0xf]
        %v268 = vld [vmem:[%s266 + $0x4] sm:$0xf]
        %v269 = vld [vmem:[%s266 + $0x8] sm:$0xf]
        %v270 = vld [vmem:[%s266 + $0xc] sm:$0xf]
        %v275 = vunpack.c.l.b16 %v267
        %v276 = vunpack.c.l.b16 %v268
        %v277 = vunpack.c.l.b16 %v269
        %v278 = vunpack.c.l.b16 %v270
        %v279 = vpack.c.b16 %v276, %v275
        %v280 = vpack.c.b16 %v278, %v277
        %v282 = vsel %vm236, %v279, 0
        %v285 = vsel %vm236, %v280, 0
        %287 = vmatpush.bf16.msra.mxu0 0
        %288 = vmatpush.bf16.msra.mxu0 0
        %289 = vmatpush.bf16.msra.mxu0 0
        %290 = vmatpush.bf16.msra.mxu0 0
        %291 = vmatpush.bf16.msra.mxu0 0
        %292 = vmatpush.bf16.msra.mxu0 0
        %293 = vmatpush.bf16.msra.mxu0 0
        %294 = vmatpush.bf16.msra.mxu0 %v234
        %295 = vmatmul.bf16.gmra.mxu0 %v282
        %v296 = vpop.f32.mrf.mxu0
        %v297 = vadd.f32 0.0, %v296
        %v298 = vpop.f32.mrf.mxu0
        %v299 = vadd.f32 0.0, %v298
        %300 = vmatmul.bf16.gmra.mxu0 %v285
        %v301 = vpop.f32.mrf.mxu0
        %v302 = vadd.f32 0.0, %v301
        %v303 = vpop.f32.mrf.mxu0
        %v304 = vadd.f32 0.0, %v303
        %305 = vdwg.mxu0
        %v306 = vpack.c.bf16 %v297, %v297
        %v307 = vpack.c.bf16 %v299, %v299
        %v308 = vpack.c.bf16 %v302, %v302
        %v309 = vpack.c.bf16 %v304, %v304
        %s310 = scalar_lea.vmem %s1, 32
        %v311 = vld [vmem:[%s310] sm:$0xf]
        %v312 = vld [vmem:[%s310 + $0x4] sm:$0xf]
        %v313 = vld [vmem:[%s310 + $0x8] sm:$0xf]
        %v314 = vld [vmem:[%s310 + $0xc] sm:$0xf]
        %v319 = vunpack.c.l.b16 %v311
        %v320 = vunpack.c.l.b16 %v312
        %v321 = vunpack.c.l.b16 %v313
        %v322 = vunpack.c.l.b16 %v314
        %v323 = vpack.c.b16 %v320, %v319
        %v324 = vpack.c.b16 %v322, %v321
        %v326 = vsel %vm236, %v323, 0
        %v329 = vsel %vm236, %v324, 0
        %331 = vmatpush.bf16.msra.mxu0 0
        %332 = vmatpush.bf16.msra.mxu0 0
        %333 = vmatpush.bf16.msra.mxu0 0
        %334 = vmatpush.bf16.msra.mxu0 0
        %335 = vmatpush.bf16.msra.mxu0 0
        %336 = vmatpush.bf16.msra.mxu0 0
        %337 = vmatpush.bf16.msra.mxu0 0
        %338 = vmatpush.bf16.msra.mxu0 %v234
        %339 = vmatmul.bf16.gmra.mxu0 %v326
        %v340 = vpop.f32.mrf.mxu0
        %v341 = vadd.f32 0.0, %v340
        %v342 = vpop.f32.mrf.mxu0
        %v343 = vadd.f32 0.0, %v342
        %344 = vmatmul.bf16.gmra.mxu0 %v329
        %v345 = vpop.f32.mrf.mxu0
        %v346 = vadd.f32 0.0, %v345
        %v347 = vpop.f32.mrf.mxu0
        %v348 = vadd.f32 0.0, %v347
        %349 = vdwg.mxu0
        %v350 = vpack.c.bf16 %v341, %v341
        %v351 = vpack.c.bf16 %v343, %v343
        %v352 = vpack.c.bf16 %v346, %v346
        %v353 = vpack.c.bf16 %v348, %v348
        %v358 = vunpack.c.l.b16 %v262
        %v359 = vunpack.c.l.b16 %v263
        %v360 = vunpack.c.l.b16 %v264
        %v361 = vunpack.c.l.b16 %v265
        %v362 = vpack.c.b16 %v359, %v358
        %v363 = vpack.c.b16 %v361, %v360
        %v368 = vunpack.c.l.b16 %v306
        %v369 = vunpack.c.l.b16 %v307
        %v370 = vunpack.c.l.b16 %v308
        %v371 = vunpack.c.l.b16 %v309
        %v372 = vpack.c.b16 %v369, %v368
        %v373 = vpack.c.b16 %v371, %v370
        %374 = vrot.lane.b32.xlu0 %v372, 64
        %v375 = vpop.permute.xlu0 %374
        %376 = vrot.lane.b32.xlu0 %v373, 64
        %v377 = vpop.permute.xlu0 %376
        %v382 = vunpack.c.l.b16 %v350
        %v383 = vunpack.c.l.b16 %v351
        %v384 = vunpack.c.l.b16 %v352
        %v385 = vunpack.c.l.b16 %v353
        %v386 = vpack.c.b16 %v383, %v382
        %v387 = vpack.c.b16 %v385, %v384
        %vm388 = vcmask 523264
        %v391 = vsel %vm388, %v362, %v375
        %v395 = vsel %vm388, %v363, %v377
        %v399 = vsel %vm388, %v386, 0
        %v402 = vsel %vm388, %v387, 0
        %v404 = vld [vmem:[#allocation2] sm:$0xff]
        %v405 = vld [vmem:[#allocation2 + $0x8] sm:$0xff]
        %v406 = vld [vmem:[#allocation2 + $0x10] sm:$0xff]
        %v407 = vld [vmem:[#allocation2 + $0x18] sm:$0xff]
        %v408 = vld [vmem:[#allocation2 + $0x20] sm:$0xff]
        %v409 = vld [vmem:[#allocation2 + $0x28] sm:$0xff]
        %v410 = vld [vmem:[#allocation2 + $0x30] sm:$0xff]
        %v411 = vld [vmem:[#allocation2 + $0x38] sm:$0xff]
        %v412 = vld [vmem:[#allocation2 + $0x40] sm:$0xff]
        %v413 = vld [vmem:[#allocation2 + $0x48] sm:$0xff]
        %v414 = vld [vmem:[#allocation2 + $0x50] sm:$0xff]
        %v415 = vld [vmem:[#allocation2 + $0x58] sm:$0xff]
        %v416 = vld [vmem:[#allocation2 + $0x60] sm:$0xff]
        %v417 = vld [vmem:[#allocation2 + $0x68] sm:$0xff]
        %v418 = vld [vmem:[#allocation2 + $0x70] sm:$0xff]
        %v419 = vld [vmem:[#allocation2 + $0x78] sm:$0xff]
        %v420 = vld [vmem:[#allocation2 + $0x80] sm:$0xff]
        %v421 = vld [vmem:[#allocation2 + $0x88] sm:$0xff]
        %v422 = vld [vmem:[#allocation2 + $0x90] sm:$0xff]
        %v423 = vld [vmem:[#allocation2 + $0x98] sm:$0xff]
        %v424 = vld [vmem:[#allocation2 + $0xa0] sm:$0xff]
        %v425 = vld [vmem:[#allocation2 + $0xa8] sm:$0xff]
        %v426 = vld [vmem:[#allocation2 + $0xb0] sm:$0xff]
        %v427 = vld [vmem:[#allocation2 + $0xb8] sm:$0xff]
        %v428 = vld [vmem:[#allocation2 + $0xc0] sm:$0xff]
        %v429 = vld [vmem:[#allocation2 + $0xc8] sm:$0xff]
        %v430 = vld [vmem:[#allocation2 + $0xd0] sm:$0xff]
        %v431 = vld [vmem:[#allocation2 + $0xd8] sm:$0xff]
        %v432 = vld [vmem:[#allocation2 + $0xe0] sm:$0xff]
        %v433 = vld [vmem:[#allocation2 + $0xe8] sm:$0xff]
        %v434 = vld [vmem:[#allocation2 + $0xf0] sm:$0xff]
        %v435 = vld [vmem:[#allocation2 + $0xf8] sm:$0xff]
        %v436 = vld [vmem:[%s3] sm:$0x3]
        %v438 = vperm.slane %v436, 0
        %v439 = vperm.slane %v436, 1
        %v474 = vunpack.c.l.b16 %v404
        %v475 = vunpack.c.h.b16 %v404
        %v476 = vunpack.c.l.b16 %v405
        %v477 = vunpack.c.h.b16 %v405
        %v478 = vunpack.c.l.b16 %v406
        %v479 = vunpack.c.h.b16 %v406
        %v480 = vunpack.c.l.b16 %v407
        %v481 = vunpack.c.h.b16 %v407
        %v482 = vunpack.c.l.b16 %v408
        %v483 = vunpack.c.h.b16 %v408
        %v484 = vunpack.c.l.b16 %v409
        %v485 = vunpack.c.h.b16 %v409
        %v486 = vunpack.c.l.b16 %v410
        %v487 = vunpack.c.h.b16 %v410
        %v488 = vunpack.c.l.b16 %v411
        %v489 = vunpack.c.h.b16 %v411
        %v490 = vunpack.c.l.b16 %v412
        %v491 = vunpack.c.h.b16 %v412
        %v492 = vunpack.c.l.b16 %v413
        %v493 = vunpack.c.h.b16 %v413
        %v494 = vunpack.c.l.b16 %v414
        %v495 = vunpack.c.h.b16 %v414
        %v496 = vunpack.c.l.b16 %v415
        %v497 = vunpack.c.h.b16 %v415
        %v498 = vunpack.c.l.b16 %v416
        %v499 = vunpack.c.h.b16 %v416
        %v500 = vunpack.c.l.b16 %v417
        %v501 = vunpack.c.h.b16 %v417
        %v502 = vunpack.c.l.b16 %v418
        %v503 = vunpack.c.h.b16 %v418
        %v504 = vunpack.c.l.b16 %v419
        %v505 = vunpack.c.h.b16 %v419
        %v506 = vunpack.c.l.b16 %v420
        %v507 = vunpack.c.h.b16 %v420
        %v508 = vunpack.c.l.b16 %v421
        %v509 = vunpack.c.h.b16 %v421
        %v510 = vunpack.c.l.b16 %v422
        %v511 = vunpack.c.h.b16 %v422
        %v512 = vunpack.c.l.b16 %v423
        %v513 = vunpack.c.h.b16 %v423
        %v514 = vunpack.c.l.b16 %v424
        %v515 = vunpack.c.h.b16 %v424
        %v516 = vunpack.c.l.b16 %v425
        %v517 = vunpack.c.h.b16 %v425
        %v518 = vunpack.c.l.b16 %v426
        %v519 = vunpack.c.h.b16 %v426
        %v520 = vunpack.c.l.b16 %v427
        %v521 = vunpack.c.h.b16 %v427
        %v522 = vunpack.c.l.b16 %v428
        %v523 = vunpack.c.h.b16 %v428
        %v524 = vunpack.c.l.b16 %v429
        %v525 = vunpack.c.h.b16 %v429
        %v526 = vunpack.c.l.b16 %v430
        %v527 = vunpack.c.h.b16 %v430
        %v528 = vunpack.c.l.b16 %v431
        %v529 = vunpack.c.h.b16 %v431
        %v530 = vunpack.c.l.b16 %v432
        %v531 = vunpack.c.h.b16 %v432
        %v532 = vunpack.c.l.b16 %v433
        %v533 = vunpack.c.h.b16 %v433
        %v534 = vunpack.c.l.b16 %v434
        %v535 = vunpack.c.h.b16 %v434
        %v536 = vunpack.c.l.b16 %v435
        %v537 = vunpack.c.h.b16 %v435
        %v538 = vpack.c.b16 %v476, %v474
        %v539 = vpack.c.b16 %v477, %v475
        %v540 = vpack.c.b16 %v480, %v478
        %v541 = vpack.c.b16 %v481, %v479
        %v542 = vpack.c.b16 %v484, %v482
        %v543 = vpack.c.b16 %v485, %v483
        %v544 = vpack.c.b16 %v488, %v486
        %v545 = vpack.c.b16 %v489, %v487
        %v546 = vpack.c.b16 %v492, %v490
        %v547 = vpack.c.b16 %v493, %v491
        %v548 = vpack.c.b16 %v496, %v494
        %v549 = vpack.c.b16 %v497, %v495
        %v550 = vpack.c.b16 %v500, %v498
        %v551 = vpack.c.b16 %v501, %v499
        %v552 = vpack.c.b16 %v504, %v502
        %v553 = vpack.c.b16 %v505, %v503
        %v554 = vpack.c.b16 %v508, %v506
        %v555 = vpack.c.b16 %v509, %v507
        %v556 = vpack.c.b16 %v512, %v510
        %v557 = vpack.c.b16 %v513, %v511
        %v558 = vpack.c.b16 %v516, %v514
        %v559 = vpack.c.b16 %v517, %v515
        %v560 = vpack.c.b16 %v520, %v518
        %v561 = vpack.c.b16 %v521, %v519
        %v562 = vpack.c.b16 %v524, %v522
        %v563 = vpack.c.b16 %v525, %v523
        %v564 = vpack.c.b16 %v528, %v526
        %v565 = vpack.c.b16 %v529, %v527
        %v566 = vpack.c.b16 %v532, %v530
        %v567 = vpack.c.b16 %v533, %v531
        %v568 = vpack.c.b16 %v536, %v534
        %v569 = vpack.c.b16 %v537, %v535
        %602 = vmatpush.bf16.msra.mxu0 %v552
        %603 = vmatpush.bf16.msra.mxu0 %v550
        %604 = vmatpush.bf16.msra.mxu0 %v548
        %605 = vmatpush.bf16.msra.mxu0 %v546
        %606 = vmatpush.bf16.msra.mxu0 %v544
        %607 = vmatpush.bf16.msra.mxu0 %v542
        %608 = vmatpush.bf16.msra.mxu0 %v540
        %609 = vmatpush.bf16.msra.mxu0 %v538
        %610 = vmatmul.bf16.gmra.mxu0 %v391
        %v611 = vpop.f32.mrf.mxu0
        %v612 = vadd.f32 %v438, %v611
        %v613 = vpop.f32.mrf.mxu0
        %v614 = vadd.f32 %v438, %v613
        %615 = vmatmul.bf16.gmra.mxu0 %v395
        %v616 = vpop.f32.mrf.mxu0
        %v617 = vadd.f32 %v438, %v616
        %v618 = vpop.f32.mrf.mxu0
        %v619 = vadd.f32 %v438, %v618
        %620 = vdwg.mxu0
        %621 = vmatpush.bf16.msra.mxu0 %v568
        %622 = vmatpush.bf16.msra.mxu0 %v566
        %623 = vmatpush.bf16.msra.mxu0 %v564
        %624 = vmatpush.bf16.msra.mxu0 %v562
        %625 = vmatpush.bf16.msra.mxu0 %v560
        %626 = vmatpush.bf16.msra.mxu0 %v558
        %627 = vmatpush.bf16.msra.mxu0 %v556
        %628 = vmatpush.bf16.msra.mxu0 %v554
        %629 = vmatmul.bf16.gmra.mxu0 %v399
        %v630 = vpop.f32.mrf.mxu0
        %v631 = vadd.f32 %v612, %v630
        %v632 = vpop.f32.mrf.mxu0
        %v633 = vadd.f32 %v614, %v632
        %634 = vmatmul.bf16.gmra.mxu0 %v402
        %v635 = vpop.f32.mrf.mxu0
        %v636 = vadd.f32 %v617, %v635
        %v637 = vpop.f32.mrf.mxu0
        %v638 = vadd.f32 %v619, %v637
        %639 = vdwg.mxu0
        %640 = vmatpush.bf16.msra.mxu0 %v553
        %641 = vmatpush.bf16.msra.mxu0 %v551
        %642 = vmatpush.bf16.msra.mxu0 %v549
        %643 = vmatpush.bf16.msra.mxu0 %v547
        %644 = vmatpush.bf16.msra.mxu0 %v545
        %645 = vmatpush.bf16.msra.mxu0 %v543
        %646 = vmatpush.bf16.msra.mxu0 %v541
        %647 = vmatpush.bf16.msra.mxu0 %v539
        %648 = vmatmul.bf16.gmra.mxu0 %v391
        %v649 = vpop.f32.mrf.mxu0
        %v650 = vadd.f32 %v439, %v649
        %v651 = vpop.f32.mrf.mxu0
        %v652 = vadd.f32 %v439, %v651
        %653 = vmatmul.bf16.gmra.mxu0 %v395
        %v654 = vpop.f32.mrf.mxu0
        %v655 = vadd.f32 %v439, %v654
        %v656 = vpop.f32.mrf.mxu0
        %v657 = vadd.f32 %v439, %v656
        %658 = vdwg.mxu0
        %659 = vmatpush.bf16.msra.mxu0 %v569
        %660 = vmatpush.bf16.msra.mxu0 %v567
        %661 = vmatpush.bf16.msra.mxu0 %v565
        %662 = vmatpush.bf16.msra.mxu0 %v563
        %663 = vmatpush.bf16.msra.mxu0 %v561
        %664 = vmatpush.bf16.msra.mxu0 %v559
        %665 = vmatpush.bf16.msra.mxu0 %v557
        %666 = vmatpush.bf16.msra.mxu0 %v555
        %667 = vmatmul.bf16.gmra.mxu0 %v399
        %v668 = vpop.f32.mrf.mxu0
        %v669 = vadd.f32 %v650, %v668
        %v670 = vpop.f32.mrf.mxu0
        %v671 = vadd.f32 %v652, %v670
        %672 = vmatmul.bf16.gmra.mxu0 %v402
        %v673 = vpop.f32.mrf.mxu0
        %v674 = vadd.f32 %v655, %v673
        %v675 = vpop.f32.mrf.mxu0
        %v676 = vadd.f32 %v657, %v675
        %677 = vdwg.mxu0
        %678 = vst [vmem:[%s207] sm:$0xff] %v631
        %679 = vst [vmem:[%s207 + $0x8] sm:$0xff] %v669
        %680 = vst [vmem:[%s207 + $0x10] sm:$0xff] %v633
        %681 = vst [vmem:[%s207 + $0x18] sm:$0xff] %v671
        %682 = vst [vmem:[%s207 + $0x20] sm:$0xff] %v636
        %683 = vst [vmem:[%s207 + $0x28] sm:$0xff] %v674
        %684 = vst [vmem:[%s207 + $0x30] sm:$0xff] %v638
        %685 = vst [vmem:[%s207 + $0x38] sm:$0xff] %v676
        %s686 = sand.u32 %s116, 1
        %s687 = scalar_lea.sflag [#allocation4], %s686
        %s688 = sand.u32 %s116, 1
        %s689 = smul.addr %s688, 64
        %s690 = scalar_lea.vmem [#allocation5], %s689
        // Predicated region
        $region41: #{tpu_custom_call.1} parent=35 // pred_check
          %p691 = pneg %p126
        $region42: #{tpu_custom_call.1} parent=35 // pred_check_branch
          %693 = sbr.rel (%p691) target = $region44
        $region43: #{tpu_custom_call.1} parent=35 // pred_region
          %695 = vsyncadd %s687, 0
          %s696 = smul.addr %s19, 8
          %s697 = smul.addr %s696, 8
          %s698 = scalar_lea.hbm %s4, %s697
          %s699 = sshll.u32 %s690, 4
          %s700 = int_to_ptr.vmem [resolvable:$true] %s699
          %s701 = sshll.u32 %s698, 4
          %s702 = int_to_ptr.hbm [resolvable:$true] %s701
          %707 = dma.vmem_to_hbm [thread:$0]  %s700, 1024, %s702, %s687, 256, 256, 16
        $region44: #{tpu_custom_call.1} parent=35 // pred_fallthru
          _
      $region36: #{tpu_custom_call.1} parent=5 // pred_fallthru
        _
      %p708 = scmp.le.s32.totalorder 2, %s14
      // Predicated region
      $region45: #{tpu_custom_call.1} parent=5 // pred_check
        %p709 = pneg %p708
      $region46: #{tpu_custom_call.1} parent=5 // pred_check_branch
        %711 = sbr.rel (%p709) target = $region48
      $region47: #{tpu_custom_call.1} parent=5 // pred_region
        %s712 = ssub.s32 %s14, 2
        // Predicated region
        $region49: #{tpu_custom_call.1} parent=47 // pred_check
          %p713 = pneg %p132
        $region50: #{tpu_custom_call.1} parent=47 // pred_check_branch
          %715 = sbr.rel (%p713) target = $region52
        $region51: #{tpu_custom_call.1} parent=47 // pred_region
          %s716 = sand.u32 %s117, 1
          %s717 = scalar_lea.sflag [#allocation4], %s716
          %s718 = sand.u32 %s117, 1
          %s719 = smul.addr %s718, 64
          %s720 = scalar_lea.vmem [#allocation5], %s719
          %722 = dma.done %s717, 1024
        $region52: #{tpu_custom_call.1} parent=47 // pred_fallthru
          _
      $region48: #{tpu_custom_call.1} parent=5 // pred_fallthru
        _
    $region6: #{tpu_custom_call.1} parent=1 // loop_footer
      %s18 = sadd.s32 1, %s14
    $region7: #{tpu_custom_call.1} parent=1 // loop_footer_branch
      %13 = sbr.rel target = $region3
    $region8: #{tpu_custom_call.1} parent=1 // loop_exit
      _
    %723 = vsyncpa [#allocation3], 1
    %s724 = scalar_lea.sflag [#allocation3], 1
    %725 = vsyncpa %s724, 1
    %726 = vsyncpa [#allocation4], 1
    %s727 = scalar_lea.sflag [#allocation4], 1
    %728 = vsyncpa %s727, 1

</llo_original>
